<compile_context>
chip_gen: v7x
topology: tpu7x:2x2x1
jax: 0.10.0
libtpu: 0.0.40
codegen_flags: <defaults>
</compile_context>

<pallas_src>
import functools

import jax
import jax.numpy as jnp
from jax.experimental import pallas as pl
from jax.experimental.pallas import tpu as pltpu


def highway_kernel(x_ref, w_ref, b_ref, o_ref, *, num_layers, sp):
    """One batch tile through all highway layers.

    x_ref: [tb, Sp]                activations (input dtype)
    w_ref: [L, Sp, 3*Sp]  bf16     fused [Wg | Wn | Wl] (pre-transposed)
    b_ref: [L, 3*Sp]      f32      fused [bg | bn | bl]
    o_ref: [tb, Sp]                output
    """
    x = x_ref[...].astype(jnp.float32)
    for l in range(num_layers):  # static unroll; layers are sequential
        # One wide MXU matmul per layer instead of three narrow ones.
        y = jnp.dot(x.astype(jnp.bfloat16), w_ref[l],
                    preferred_element_type=jnp.float32) + b_ref[l][None, :]
        gate = jax.nn.sigmoid(y[:, :sp])            # lane-aligned column slices
        nonlinear = jax.nn.relu(y[:, sp:2 * sp])
        linear = y[:, 2 * sp:]
        # linear + g*(nl - linear) == g*nl + (1-g)*linear, one fewer VPU mul.
        x = linear + gate * (nonlinear - linear)
    o_ref[...] = x.astype(o_ref.dtype)


def highway_forward(x, wg, bg, wn, bn, wl, bl, *, max_batch_tile=256):
    """x: [B, S]; wg/wn/wl: [L, S, S] (already W^T); bg/bn/bl: [L, S]."""
    B, S = x.shape
    L = wg.shape[0]

    # Lane-dense feature padding (multiple of 128). Zero-padded rows/cols keep
    # padded activation columns exactly zero through every layer:
    #   gate_pad = sigmoid(0) = 0.5, nl_pad = relu(0) = 0, lin_pad = 0 -> 0.
    Sp = max(128, pl.cdiv(S, 128) * 128)

    def pad_w(w):  # [L, S, S] -> [L, Sp, Sp]
        return jnp.pad(w, ((0, 0), (0, Sp - S), (0, Sp - S)))

    def pad_b(b):  # [L, S] -> [L, Sp]
        return jnp.pad(b, ((0, 0), (0, Sp - S)))

    # Fused, pre-transposed weights: [L, Sp, 3*Sp] bf16, biases [L, 3*Sp] f32.
    w_cat = jnp.concatenate([pad_w(wg), pad_w(wn), pad_w(wl)],
                            axis=-1).astype(jnp.bfloat16)
    b_cat = jnp.concatenate([pad_b(bg), pad_b(bn), pad_b(bl)],
                            axis=-1).astype(jnp.float32)

    # Batch tiling: pad B up to a multiple of the tile (tile itself a multiple
    # of 8 sublanes), grid iterates batch tiles in parallel.
    tb = min(max_batch_tile, pl.cdiv(B, 8) * 8)
    Bp = pl.cdiv(B, tb) * tb
    x_pad = jnp.pad(x, ((0, Bp - B), (0, Sp - S)))
    grid = (Bp // tb,)

    x_spec = pl.BlockSpec((tb, Sp), lambda i: (i, 0))
    w_spec = pl.BlockSpec((L, Sp, 3 * Sp), lambda i: (0, 0, 0))
    b_spec = pl.BlockSpec((L, 3 * Sp), lambda i: (0, 0))

    # Explicit scoped-VMEM budget: double-buffered operands + output + headroom.
    vmem_bytes = 2 * (w_cat.size * 2 + b_cat.size * 4
                      + 2 * tb * Sp * x.dtype.itemsize) + (8 << 20)
    vmem_bytes = int(min(vmem_bytes, 64 << 20))

    out = pl.pallas_call(
        functools.partial(highway_kernel, num_layers=L, sp=Sp),
        out_shape=jax.ShapeDtypeStruct((Bp, Sp), x.dtype),
        grid_spec=pltpu.PrefetchScalarGridSpec(
            num_scalar_prefetch=0,
            grid=grid,
            in_specs=[x_spec, w_spec, b_spec],
            out_specs=x_spec,
        ),
        compiler_params=pltpu.CompilerParams(
            dimension_semantics=("parallel",),
            vmem_limit_bytes=vmem_bytes),
    )(x_pad, w_cat, b_cat)

    return out[:B, :S]


def highway_reference(x, wg, bg, wn, bn, wl, bl):
    """Pure-JAX f32 reference of the PyTorch forward."""
    L = wg.shape[0]
    for l in range(L):
        gate = jax.nn.sigmoid(x @ wg[l] + bg[l])
        nonlinear = jax.nn.relu(x @ wn[l] + bn[l])
        linear = x @ wl[l] + bl[l]
        x = gate * nonlinear + (1.0 - gate) * linear
    return x


if __name__ == "__main__":
    size = 32          # "size" of the highway linear layers
    num_layers = 2
    batch = 8

    key = jax.random.PRNGKey(0)
    keys = jax.random.split(key, 7)
    bound = 1.0 / jnp.sqrt(size)  # matches nn.Linear default init range

    # Weights stored as [L, size_in, size_out] (i.e. PyTorch W^T), biases [L, size].
    wg = jax.random.uniform(keys[0], (num_layers, size, size), jnp.float32, -bound, bound)
    bg = jax.random.uniform(keys[1], (num_layers, size), jnp.float32, -bound, bound)
    wn = jax.random.uniform(keys[2], (num_layers, size, size), jnp.float32, -bound, bound)
    bn = jax.random.uniform(keys[3], (num_layers, size), jnp.float32, -bound, bound)
    wl = jax.random.uniform(keys[4], (num_layers, size, size), jnp.float32, -bound, bound)
    bl = jax.random.uniform(keys[5], (num_layers, size), jnp.float32, -bound, bound)

    x = jax.random.normal(keys[6], (batch, size), jnp.float32)

    out = highway_forward(x, wg, bg, wn, bn, wl, bl)
    out = jax.block_until_ready(out)

    ref = highway_reference(x, wg, bg, wn, bn, wl, bl)
    assert out.shape == (batch, size)
    # bf16 MXU inputs with f32 accumulation -> loosened tolerance vs f32 ref.
    assert jnp.allclose(out, ref, atol=2e-2, rtol=2e-2), (
        f"mismatch vs reference, max abs err={jnp.max(jnp.abs(out - ref))}")

    print("KERNEL_OK")
</pallas_src>

<mosaic_0001>
module attributes {stable_mosaic.version = 11 : i64} {
  func.func @highway_kernel(%arg0: i32, %arg1: memref<8x128xf32, #tpu.memory_space<vmem>>, %arg2: memref<2x128x384xbf16, #tpu.memory_space<vmem>>, %arg3: memref<2x384xf32, #tpu.memory_space<vmem>>, %arg4: memref<8x128xf32, #tpu.memory_space<vmem>>) attributes {dimension_semantics = [#tpu.dimension_semantics<parallel>], iteration_bounds = array<i64: 1>, scalar_prefetch = 0 : i64, scratch_operands = 0 : i64, tpu.core_type = #tpu.core_type<tc>, window_params = [{transform_indices = @transform_0, window_bounds = array<i64: 8, 128>}, {pipeline_mode = #tpu.pipeline_mode<synchronous>, transform_indices = @transform_1, window_bounds = array<i64: 2, 128, 384>}, {pipeline_mode = #tpu.pipeline_mode<synchronous>, transform_indices = @transform_2, window_bounds = array<i64: 2, 384>}, {transform_indices = @transform_3, window_bounds = array<i64: 8, 128>}]} {
    %c0 = arith.constant 0 : index
    %c0_0 = arith.constant 0 : index
    %0 = vector.load %arg1[%c0, %c0_0] : memref<8x128xf32, #tpu.memory_space<vmem>>, vector<8x128xf32>
    %1 = arith.truncf %0 : vector<8x128xf32> to vector<8x128xbf16>
    %c0_1 = arith.constant 0 : index
    %c0_2 = arith.constant 0 : index
    %c0_3 = arith.constant 0 : index
    %2 = vector.load %arg2[%c0_1, %c0_2, %c0_3] : memref<2x128x384xbf16, #tpu.memory_space<vmem>>, vector<1x128x384xbf16>
    %3 = vector.shape_cast %2 : vector<1x128x384xbf16> to vector<128x384xbf16>
    %cst = arith.constant dense<0.000000e+00> : vector<8x384xf32>
    %4 = tpu.matmul %1, %3, %cst {dimension_numbers = #tpu.dot_dimension_numbers<[1], [0], [0], [1], [0, 0, 1, 1], [], []>} : vector<8x128xbf16>, vector<128x384xbf16>, vector<8x384xf32> -> vector<8x384xf32>
    %c0_4 = arith.constant 0 : index
    %c0_5 = arith.constant 0 : index
    %5 = vector.load %arg3[%c0_4, %c0_5] : memref<2x384xf32, #tpu.memory_space<vmem>>, vector<1x384xf32>
    %6 = vector.shape_cast %5 : vector<1x384xf32> to vector<384xf32>
    %7 = vector.shape_cast %6 : vector<384xf32> to vector<1x384xf32>
    %8 = vector.broadcast %7 : vector<1x384xf32> to vector<8x384xf32>
    %9 = arith.addf %4, %8 : vector<8x384xf32>
    %10 = vector.extract_strided_slice %9 {offsets = [0, 0], sizes = [8, 128], strides = [1, 1]} : vector<8x384xf32> to vector<8x128xf32>
    %11 = arith.negf %10 : vector<8x128xf32>
    %12 = math.exp %11 : vector<8x128xf32>
    %cst_6 = arith.constant 1.000000e+00 : f32
    %13 = vector.broadcast %cst_6 : f32 to vector<8x128xf32>
    %14 = arith.addf %13, %12 : vector<8x128xf32>
    %15 = arith.divf %13, %14 : vector<8x128xf32>
    %16 = vector.extract_strided_slice %9 {offsets = [0, 128], sizes = [8, 128], strides = [1, 1]} : vector<8x384xf32> to vector<8x128xf32>
    %cst_7 = arith.constant 0.000000e+00 : f32
    %17 = vector.broadcast %cst_7 : f32 to vector<8x128xf32>
    %18 = arith.maximumf %16, %17 : vector<8x128xf32>
    %19 = vector.extract_strided_slice %9 {offsets = [0, 256], sizes = [8, 128], strides = [1, 1]} : vector<8x384xf32> to vector<8x128xf32>
    %20 = arith.subf %18, %19 : vector<8x128xf32>
    %21 = arith.mulf %15, %20 : vector<8x128xf32>
    %22 = arith.addf %19, %21 : vector<8x128xf32>
    %23 = arith.truncf %22 : vector<8x128xf32> to vector<8x128xbf16>
    %c1 = arith.constant 1 : index
    %c0_8 = arith.constant 0 : index
    %c0_9 = arith.constant 0 : index
    %24 = vector.load %arg2[%c1, %c0_8, %c0_9] : memref<2x128x384xbf16, #tpu.memory_space<vmem>>, vector<1x128x384xbf16>
    %25 = vector.shape_cast %24 : vector<1x128x384xbf16> to vector<128x384xbf16>
    %cst_10 = arith.constant dense<0.000000e+00> : vector<8x384xf32>
    %26 = tpu.matmul %23, %25, %cst_10 {dimension_numbers = #tpu.dot_dimension_numbers<[1], [0], [0], [1], [0, 0, 1, 1], [], []>} : vector<8x128xbf16>, vector<128x384xbf16>, vector<8x384xf32> -> vector<8x384xf32>
    %c1_11 = arith.constant 1 : index
    %c0_12 = arith.constant 0 : index
    %27 = vector.load %arg3[%c1_11, %c0_12] : memref<2x384xf32, #tpu.memory_space<vmem>>, vector<1x384xf32>
    %28 = vector.shape_cast %27 : vector<1x384xf32> to vector<384xf32>
    %29 = vector.shape_cast %28 : vector<384xf32> to vector<1x384xf32>
    %30 = vector.broadcast %29 : vector<1x384xf32> to vector<8x384xf32>
    %31 = arith.addf %26, %30 : vector<8x384xf32>
    %32 = vector.extract_strided_slice %31 {offsets = [0, 0], sizes = [8, 128], strides = [1, 1]} : vector<8x384xf32> to vector<8x128xf32>
    %33 = arith.negf %32 : vector<8x128xf32>
    %34 = math.exp %33 : vector<8x128xf32>
    %cst_13 = arith.constant 1.000000e+00 : f32
    %35 = vector.broadcast %cst_13 : f32 to vector<8x128xf32>
    %36 = arith.addf %35, %34 : vector<8x128xf32>
    %37 = arith.divf %35, %36 : vector<8x128xf32>
    %38 = vector.extract_strided_slice %31 {offsets = [0, 128], sizes = [8, 128], strides = [1, 1]} : vector<8x384xf32> to vector<8x128xf32>
    %cst_14 = arith.constant 0.000000e+00 : f32
    %39 = vector.broadcast %cst_14 : f32 to vector<8x128xf32>
    %40 = arith.maximumf %38, %39 : vector<8x128xf32>
    %41 = vector.extract_strided_slice %31 {offsets = [0, 256], sizes = [8, 128], strides = [1, 1]} : vector<8x384xf32> to vector<8x128xf32>
    %42 = arith.subf %40, %41 : vector<8x128xf32>
    %43 = arith.mulf %37, %42 : vector<8x128xf32>
    %44 = arith.addf %41, %43 : vector<8x128xf32>
    %c0_15 = arith.constant 0 : index
    %c0_16 = arith.constant 0 : index
    %45 = vector.load %arg4[%c0_15, %c0_16] : memref<8x128xf32, #tpu.memory_space<vmem>>, vector<8x128xf32>
    tpu.vector_store %arg4[%c0_15, %c0_16], %44 {strides = array<i32>} : memref<8x128xf32, #tpu.memory_space<vmem>>, vector<8x128xf32>,
    return
  }
  func.func @transform_0(%arg0: i32) -> (i32, i32) {
    %c0_i32 = arith.constant 0 : i32
    %c0_i32_0 = arith.constant 0 : i32
    return %arg0, %c0_i32 : i32, i32
  }
  func.func @transform_1(%arg0: i32) -> (i32, i32, i32) {
    %c0_i32 = arith.constant 0 : i32
    %c0_i32_0 = arith.constant 0 : i32
    %c0_i32_1 = arith.constant 0 : i32
    %c0_i32_2 = arith.constant 0 : i32
    return %c0_i32, %c0_i32_0, %c0_i32_1 : i32, i32, i32
  }
  func.func @transform_2(%arg0: i32) -> (i32, i32) {
    %c0_i32 = arith.constant 0 : i32
    %c0_i32_0 = arith.constant 0 : i32
    %c0_i32_1 = arith.constant 0 : i32
    return %c0_i32, %c0_i32_0 : i32, i32
  }
  func.func @transform_3(%arg0: i32) -> (i32, i32) {
    %c0_i32 = arith.constant 0 : i32
    %c0_i32_0 = arith.constant 0 : i32
    return %arg0, %c0_i32 : i32, i32
  }
}

</mosaic_0001>

<llo_original>
// kernel: tpu_custom_call.1
$region0: #{tpu_custom_call.1}
  #allocation0 [shape = 'u32[]', space=smem, size = 0x4, offset = 0x4, fixed_abs, tag = 'smem constant byte address 0x4 - core index']
  #allocation1 [shape = 'u32[144,128]{1,0:T(1,128)}', space=vmem, size = 0x12000, scoped, tag = 'internal scratch']
  %s0 = inlined_call_operand.hbm [shape: f32[8,128], index: 0, kind: input, shape index: {}]
  %s1 = inlined_call_operand.hbm [shape: bf16[2,128,384], index: 1, kind: input, shape index: {}]
  %s2 = inlined_call_operand.vmem [shape: f32[2,384], index: 2, kind: input, shape index: {}]
  %s3 = inlined_call_operand.hbm [shape: f32[8,128], index: 3, kind: output, shape index: {}]
  %s4 = sld [smem:[#allocation0]]
  $region30: #{tpu_custom_call.1} parent=0
    _
  %s6 = ssub.s32 1, %s4
  %s7 = scalar_select 0, %s6, %s4
  $region1: #{tpu_custom_call.1} parent=0
    #allocation2 [shape = 'u8[4096]{0}', space=vmem, size = 0x1000, scoped, tag = 'input window, operand 0, single buffered']
    #allocation3 [shape = 's32[1]{0}', space=sflag, size = 0x4, scoped, tag = 'scoped memory for tpu_custom_call.1']
    #allocation4 [shape = 's32[1]{0}', space=sflag, size = 0x4, scoped, tag = 'scoped memory for tpu_custom_call.1']
    #allocation5 [shape = 'u8[196608]{0}', space=vmem, size = 0x30000, scoped, tag = 'input window, operand 1, single buffered']
    #allocation6 [shape = 's32[1]{0}', space=sflag, size = 0x4, scoped, tag = 'scoped memory for tpu_custom_call.1']
    #allocation7 [shape = 'u8[4096]{0}', space=vmem, size = 0x1000, scoped, tag = 'output window, operand 0, single buffered']
    %8 = vsyncpa [#allocation3], 0
    %9 = vsyncpa [#allocation6], 0
    %10 = vsyncpa [#allocation4], 0
    // Predicated region
    $region2: #{tpu_custom_call.1} parent=1 // pred_check
      _
    $region3: #{tpu_custom_call.1} parent=1 // pred_check_branch
      %12 = sbr.rel (0) target = $region5
    $region4: #{tpu_custom_call.1} parent=1 // pred_region
      %s14 = ssub.s32 128, 128
      %15 = vsyncadd [#allocation3], %s14
      %s17 = sshll.u32 [#allocation2], 4
      %s18 = int_to_ptr.vmem [resolvable:$true] %s17
      %20 = dma.hbm_to_vmem [thread:$0]  %s0, 128, %s18, [#allocation3]
    $region5: #{tpu_custom_call.1} parent=1 // pred_fallthru
      _
    // Predicated region
    $region6: #{tpu_custom_call.1} parent=1 // pred_check
      _
    $region7: #{tpu_custom_call.1} parent=1 // pred_check_branch
      %22 = sbr.rel (0) target = $region9
    $region8: #{tpu_custom_call.1} parent=1 // pred_region
      %s24 = ssub.s32 6144, 6144
      %25 = vsyncadd [#allocation6], %s24
      %s26 = sshll.u32 [#allocation5], 4
      %s27 = int_to_ptr.vmem [resolvable:$true] %s26
      %32 = dma.hbm_to_vmem [thread:$0]  %s1, 6144, %s27, [#allocation6], 192, 192, 12
    $region9: #{tpu_custom_call.1} parent=1 // pred_fallthru
      _
    // Predicated region
    $region10: #{tpu_custom_call.1} parent=1 // pred_check
      _
    $region11: #{tpu_custom_call.1} parent=1 // pred_check_branch
      %34 = sbr.rel (0) target = $region13
    $region12: #{tpu_custom_call.1} parent=1 // pred_region
      _
    $region13: #{tpu_custom_call.1} parent=1 // pred_fallthru
      _
    // Predicated region
    $region14: #{tpu_custom_call.1} parent=1 // pred_check
      _
    $region15: #{tpu_custom_call.1} parent=1 // pred_check_branch
      %36 = sbr.rel (0) target = $region17
    $region16: #{tpu_custom_call.1} parent=1 // pred_region
      %37 = dma.done [#allocation3], 128
    $region17: #{tpu_custom_call.1} parent=1 // pred_fallthru
      _
    // Predicated region
    $region18: #{tpu_custom_call.1} parent=1 // pred_check
      _
    $region19: #{tpu_custom_call.1} parent=1 // pred_check_branch
      %39 = sbr.rel (0) target = $region21
    $region20: #{tpu_custom_call.1} parent=1 // pred_region
      %40 = dma.done [#allocation6], 6144
    $region21: #{tpu_custom_call.1} parent=1 // pred_fallthru
      _
    %v42 = vld [vmem:[#allocation2] sm:$0xff]
    %v43 = vpack.c.bf16 %v42, %v42
    %v44 = vld [vmem:[#allocation5] sm:$0xff]
    %v45 = vld [vmem:[#allocation5 + $0x8] sm:$0xf]
    %v46 = vld [vmem:[#allocation5 + $0xc] sm:$0xff]
    %v47 = vld [vmem:[#allocation5 + $0x14] sm:$0xf]
    %v48 = vld [vmem:[#allocation5 + $0x18] sm:$0xff]
    %v49 = vld [vmem:[#allocation5 + $0x20] sm:$0xf]
    %v50 = vld [vmem:[#allocation5 + $0x24] sm:$0xff]
    %v51 = vld [vmem:[#allocation5 + $0x2c] sm:$0xf]
    %v52 = vld [vmem:[#allocation5 + $0x30] sm:$0xff]
    %v53 = vld [vmem:[#allocation5 + $0x38] sm:$0xf]
    %v54 = vld [vmem:[#allocation5 + $0x3c] sm:$0xff]
    %v55 = vld [vmem:[#allocation5 + $0x44] sm:$0xf]
    %v56 = vld [vmem:[#allocation5 + $0x48] sm:$0xff]
    %v57 = vld [vmem:[#allocation5 + $0x50] sm:$0xf]
    %v58 = vld [vmem:[#allocation5 + $0x54] sm:$0xff]
    %v59 = vld [vmem:[#allocation5 + $0x5c] sm:$0xf]
    %v60 = vld [vmem:[#allocation5 + $0x60] sm:$0xff]
    %v61 = vld [vmem:[#allocation5 + $0x68] sm:$0xf]
    %v62 = vld [vmem:[#allocation5 + $0x6c] sm:$0xff]
    %v63 = vld [vmem:[#allocation5 + $0x74] sm:$0xf]
    %v64 = vld [vmem:[#allocation5 + $0x78] sm:$0xff]
    %v65 = vld [vmem:[#allocation5 + $0x80] sm:$0xf]
    %v66 = vld [vmem:[#allocation5 + $0x84] sm:$0xff]
    %v67 = vld [vmem:[#allocation5 + $0x8c] sm:$0xf]
    %v68 = vld [vmem:[#allocation5 + $0x90] sm:$0xff]
    %v69 = vld [vmem:[#allocation5 + $0x98] sm:$0xf]
    %v70 = vld [vmem:[#allocation5 + $0x9c] sm:$0xff]
    %v71 = vld [vmem:[#allocation5 + $0xa4] sm:$0xf]
    %v72 = vld [vmem:[#allocation5 + $0xa8] sm:$0xff]
    %v73 = vld [vmem:[#allocation5 + $0xb0] sm:$0xf]
    %v74 = vld [vmem:[#allocation5 + $0xb4] sm:$0xff]
    %v75 = vld [vmem:[#allocation5 + $0xbc] sm:$0xf]
    %v76 = vld [vmem:[%s2] ss:$2 sm:$0x7]
    %v78 = vlaneseq
    %v79 = vshrl.u32 %v78, 7
    %v80 = vsub.s32 0, %v79
    %v81 = vrot.slane %v76, %v80
    %v82 = vlaneseq
    %v83 = vshrl.u32 %v82, 7
    %v84 = vsub.s32 1, %v83
    %v85 = vrot.slane %v76, %v84
    %v86 = vlaneseq
    %v87 = vshrl.u32 %v86, 7
    %v88 = vsub.s32 2, %v87
    %v89 = vrot.slane %v76, %v88
    %v125 = vunpack.c.l.b16 %v44
    %v126 = vunpack.c.h.b16 %v44
    %v127 = vunpack.c.l.b16 %v45
    %v128 = vunpack.c.l.b16 %v46
    %v129 = vunpack.c.h.b16 %v46
    %v130 = vunpack.c.l.b16 %v47
    %v131 = vunpack.c.l.b16 %v48
    %v132 = vunpack.c.h.b16 %v48
    %v133 = vunpack.c.l.b16 %v49
    %v134 = vunpack.c.l.b16 %v50
    %v135 = vunpack.c.h.b16 %v50
    %v136 = vunpack.c.l.b16 %v51
    %v137 = vunpack.c.l.b16 %v52
    %v138 = vunpack.c.h.b16 %v52
    %v139 = vunpack.c.l.b16 %v53
    %v140 = vunpack.c.l.b16 %v54
    %v141 = vunpack.c.h.b16 %v54
    %v142 = vunpack.c.l.b16 %v55
    %v143 = vunpack.c.l.b16 %v56
    %v144 = vunpack.c.h.b16 %v56
    %v145 = vunpack.c.l.b16 %v57
    %v146 = vunpack.c.l.b16 %v58
    %v147 = vunpack.c.h.b16 %v58
    %v148 = vunpack.c.l.b16 %v59
    %v149 = vunpack.c.l.b16 %v60
    %v150 = vunpack.c.h.b16 %v60
    %v151 = vunpack.c.l.b16 %v61
    %v152 = vunpack.c.l.b16 %v62
    %v153 = vunpack.c.h.b16 %v62
    %v154 = vunpack.c.l.b16 %v63
    %v155 = vunpack.c.l.b16 %v64
    %v156 = vunpack.c.h.b16 %v64
    %v157 = vunpack.c.l.b16 %v65
    %v158 = vunpack.c.l.b16 %v66
    %v159 = vunpack.c.h.b16 %v66
    %v160 = vunpack.c.l.b16 %v67
    %v161 = vunpack.c.l.b16 %v68
    %v162 = vunpack.c.h.b16 %v68
    %v163 = vunpack.c.l.b16 %v69
    %v164 = vunpack.c.l.b16 %v70
    %v165 = vunpack.c.h.b16 %v70
    %v166 = vunpack.c.l.b16 %v71
    %v167 = vunpack.c.l.b16 %v72
    %v168 = vunpack.c.h.b16 %v72
    %v169 = vunpack.c.l.b16 %v73
    %v170 = vunpack.c.l.b16 %v74
    %v171 = vunpack.c.h.b16 %v74
    %v172 = vunpack.c.l.b16 %v75
    %v173 = vpack.c.b16 %v128, %v125
    %v174 = vpack.c.b16 %v129, %v126
    %v175 = vpack.c.b16 %v130, %v127
    %v176 = vpack.c.b16 %v134, %v131
    %v177 = vpack.c.b16 %v135, %v132
    %v178 = vpack.c.b16 %v136, %v133
    %v179 = vpack.c.b16 %v140, %v137
    %v180 = vpack.c.b16 %v141, %v138
    %v181 = vpack.c.b16 %v142, %v139
    %v182 = vpack.c.b16 %v146, %v143
    %v183 = vpack.c.b16 %v147, %v144
    %v184 = vpack.c.b16 %v148, %v145
    %v185 = vpack.c.b16 %v152, %v149
    %v186 = vpack.c.b16 %v153, %v150
    %v187 = vpack.c.b16 %v154, %v151
    %v188 = vpack.c.b16 %v158, %v155
    %v189 = vpack.c.b16 %v159, %v156
    %v190 = vpack.c.b16 %v160, %v157
    %v191 = vpack.c.b16 %v164, %v161
    %v192 = vpack.c.b16 %v165, %v162
    %v193 = vpack.c.b16 %v166, %v163
    %v194 = vpack.c.b16 %v170, %v167
    %v195 = vpack.c.b16 %v171, %v168
    %v196 = vpack.c.b16 %v172, %v169
    %221 = vmatprep.subr.bf16.mxu0 %v174
    %222 = vmatpush1.bf16.msra.mxu0 %v173
    %223 = vmatprep.subr.bf16.mxu0 %v177
    %224 = vmatpush1.bf16.msra.mxu0 %v176
    %225 = vmatprep.subr.bf16.mxu0 %v180
    %226 = vmatpush1.bf16.msra.mxu0 %v179
    %227 = vmatprep.subr.bf16.mxu0 %v183
    %228 = vmatpush1.bf16.msra.mxu0 %v182
    %229 = vmatprep.subr.bf16.mxu0 %v186
    %230 = vmatpush1.bf16.msra.mxu0 %v185
    %231 = vmatprep.subr.bf16.mxu0 %v189
    %232 = vmatpush1.bf16.msra.mxu0 %v188
    %233 = vmatprep.subr.bf16.mxu0 %v192
    %234 = vmatpush1.bf16.msra.mxu0 %v191
    %235 = vmatprep.subr.bf16.mxu0 %v195
    %236 = vmatpush1.bf16.msra.mxu0 %v194
    %237 = vmatprep.subr.bf16.mxu0 0
    %238 = vmatpush1.bf16.msra.mxu0 0
    %239 = vmatprep.subr.bf16.mxu0 0
    %240 = vmatpush1.bf16.msra.mxu0 0
    %241 = vmatprep.subr.bf16.mxu0 0
    %242 = vmatpush1.bf16.msra.mxu0 0
    %243 = vmatprep.subr.bf16.mxu0 0
    %244 = vmatpush1.bf16.msra.mxu0 0
    %245 = vmatprep.subr.bf16.mxu0 0
    %246 = vmatpush1.bf16.msra.mxu0 0
    %247 = vmatprep.subr.bf16.mxu0 0
    %248 = vmatpush1.bf16.msra.mxu0 0
    %249 = vmatprep.subr.bf16.mxu0 0
    %250 = vmatpush1.bf16.msra.mxu0 0
    %251 = vmatprep.subr.bf16.mxu0 0
    %252 = vmatpush1.bf16.msra.mxu0 0
    %253 = vmatprep.mubr.bf16.mxu0 0
    %254 = vmatmul.mubr.bf16.gmra.mrb[0].mxu0 %v43
    %v255 = vpop.f32.mrb[0].mxu0
    %v256 = vadd.f32 %v81, %v255
    %v257 = vpop.f32.mrb[0].mxu0
    %v258 = vadd.f32 %v85, %v257
    %v259 = vpop.f32.mrb[0].mxu0
    %v260 = vpop.f32.mrb[0].mxu0
    %261 = vdwg.mxu0
    %262 = vmatprep.subr.bf16.mxu0 0
    %263 = vmatpush1.bf16.msra.mxu0 %v175
    %264 = vmatprep.subr.bf16.mxu0 0
    %265 = vmatpush1.bf16.msra.mxu0 %v178
    %266 = vmatprep.subr.bf16.mxu0 0
    %267 = vmatpush1.bf16.msra.mxu0 %v181
    %268 = vmatprep.subr.bf16.mxu0 0
    %269 = vmatpush1.bf16.msra.mxu0 %v184
    %270 = vmatprep.subr.bf16.mxu0 0
    %271 = vmatpush1.bf16.msra.mxu0 %v187
    %272 = vmatprep.subr.bf16.mxu0 0
    %273 = vmatpush1.bf16.msra.mxu0 %v190
    %274 = vmatprep.subr.bf16.mxu0 0
    %275 = vmatpush1.bf16.msra.mxu0 %v193
    %276 = vmatprep.subr.bf16.mxu0 0
    %277 = vmatpush1.bf16.msra.mxu0 %v196
    %278 = vmatprep.subr.bf16.mxu0 0
    %279 = vmatpush1.bf16.msra.mxu0 0
    %280 = vmatprep.subr.bf16.mxu0 0
    %281 = vmatpush1.bf16.msra.mxu0 0
    %282 = vmatprep.subr.bf16.mxu0 0
    %283 = vmatpush1.bf16.msra.mxu0 0
    %284 = vmatprep.subr.bf16.mxu0 0
    %285 = vmatpush1.bf16.msra.mxu0 0
    %286 = vmatprep.subr.bf16.mxu0 0
    %287 = vmatpush1.bf16.msra.mxu0 0
    %288 = vmatprep.subr.bf16.mxu0 0
    %289 = vmatpush1.bf16.msra.mxu0 0
    %290 = vmatprep.subr.bf16.mxu0 0
    %291 = vmatpush1.bf16.msra.mxu0 0
    %292 = vmatprep.subr.bf16.mxu0 0
    %293 = vmatpush1.bf16.msra.mxu0 0
    %294 = vmatprep.mubr.bf16.mxu0 0
    %295 = vmatmul.mubr.bf16.gmra.mrb[0].mxu0 %v43
    %v296 = vpop.f32.mrb[0].mxu0
    %v297 = vadd.f32 %v89, %v296
    %v298 = vpop.f32.mrb[0].mxu0
    %v299 = vpop.f32.mrb[0].mxu0
    %v300 = vpop.f32.mrb[0].mxu0
    %301 = vdwg.mxu0
    %v302 = vxor.u32 %v256, 2147483648
    %v303 = vmul.f32 %v302, 1.442695
    %v304 = vpow.pop %v303
    %v305 = vadd.f32 %v304, 1.0
    %v306 = vrcp.pop %v305
    %v307 = vmul.f32 1.0, %v306
    %v308 = vmax.f32 %v258, 0.0
    %v309 = vsub.f32 %v308, %v297
    %v310 = vmul.f32 %v307, %v309
    %v311 = vadd.f32 %v297, %v310
    %v312 = vpack.c.bf16 %v311, %v311
    %s313 = scalar_lea.vmem [#allocation5], 192
    %v314 = vld [vmem:[%s313] sm:$0xff]
    %v315 = vld [vmem:[%s313 + $0x8] sm:$0xf]
    %v316 = vld [vmem:[%s313 + $0xc] sm:$0xff]
    %v317 = vld [vmem:[%s313 + $0x14] sm:$0xf]
    %v318 = vld [vmem:[%s313 + $0x18] sm:$0xff]
    %v319 = vld [vmem:[%s313 + $0x20] sm:$0xf]
    %v320 = vld [vmem:[%s313 + $0x24] sm:$0xff]
    %v321 = vld [vmem:[%s313 + $0x2c] sm:$0xf]
    %v322 = vld [vmem:[%s313 + $0x30] sm:$0xff]
    %v323 = vld [vmem:[%s313 + $0x38] sm:$0xf]
    %v324 = vld [vmem:[%s313 + $0x3c] sm:$0xff]
    %v325 = vld [vmem:[%s313 + $0x44] sm:$0xf]
    %v326 = vld [vmem:[%s313 + $0x48] sm:$0xff]
    %v327 = vld [vmem:[%s313 + $0x50] sm:$0xf]
    %v328 = vld [vmem:[%s313 + $0x54] sm:$0xff]
    %v329 = vld [vmem:[%s313 + $0x5c] sm:$0xf]
    %v330 = vld [vmem:[%s313 + $0x60] sm:$0xff]
    %v331 = vld [vmem:[%s313 + $0x68] sm:$0xf]
    %v332 = vld [vmem:[%s313 + $0x6c] sm:$0xff]
    %v333 = vld [vmem:[%s313 + $0x74] sm:$0xf]
    %v334 = vld [vmem:[%s313 + $0x78] sm:$0xff]
    %v335 = vld [vmem:[%s313 + $0x80] sm:$0xf]
    %v336 = vld [vmem:[%s313 + $0x84] sm:$0xff]
    %v337 = vld [vmem:[%s313 + $0x8c] sm:$0xf]
    %v338 = vld [vmem:[%s313 + $0x90] sm:$0xff]
    %v339 = vld [vmem:[%s313 + $0x98] sm:$0xf]
    %v340 = vld [vmem:[%s313 + $0x9c] sm:$0xff]
    %v341 = vld [vmem:[%s313 + $0xa4] sm:$0xf]
    %v342 = vld [vmem:[%s313 + $0xa8] sm:$0xff]
    %v343 = vld [vmem:[%s313 + $0xb0] sm:$0xf]
    %v344 = vld [vmem:[%s313 + $0xb4] sm:$0xff]
    %v345 = vld [vmem:[%s313 + $0xbc] sm:$0xf]
    %s346 = scalar_lea.vmem %s2, 1
    %v347 = vld [vmem:[%s346] ss:$2 sm:$0x7]
    %v349 = vlaneseq
    %v350 = vshrl.u32 %v349, 7
    %v351 = vsub.s32 0, %v350
    %v352 = vrot.slane %v347, %v351
    %v353 = vlaneseq
    %v354 = vshrl.u32 %v353, 7
    %v355 = vsub.s32 1, %v354
    %v356 = vrot.slane %v347, %v355
    %v357 = vlaneseq
    %v358 = vshrl.u32 %v357, 7
    %v359 = vsub.s32 2, %v358
    %v360 = vrot.slane %v347, %v359
    %v396 = vunpack.c.l.b16 %v314
    %v397 = vunpack.c.h.b16 %v314
    %v398 = vunpack.c.l.b16 %v315
    %v399 = vunpack.c.l.b16 %v316
    %v400 = vunpack.c.h.b16 %v316
    %v401 = vunpack.c.l.b16 %v317
    %v402 = vunpack.c.l.b16 %v318
    %v403 = vunpack.c.h.b16 %v318
    %v404 = vunpack.c.l.b16 %v319
    %v405 = vunpack.c.l.b16 %v320
    %v406 = vunpack.c.h.b16 %v320
    %v407 = vunpack.c.l.b16 %v321
    %v408 = vunpack.c.l.b16 %v322
    %v409 = vunpack.c.h.b16 %v322
    %v410 = vunpack.c.l.b16 %v323
    %v411 = vunpack.c.l.b16 %v324
    %v412 = vunpack.c.h.b16 %v324
    %v413 = vunpack.c.l.b16 %v325
    %v414 = vunpack.c.l.b16 %v326
    %v415 = vunpack.c.h.b16 %v326
    %v416 = vunpack.c.l.b16 %v327
    %v417 = vunpack.c.l.b16 %v328
    %v418 = vunpack.c.h.b16 %v328
    %v419 = vunpack.c.l.b16 %v329
    %v420 = vunpack.c.l.b16 %v330
    %v421 = vunpack.c.h.b16 %v330
    %v422 = vunpack.c.l.b16 %v331
    %v423 = vunpack.c.l.b16 %v332
    %v424 = vunpack.c.h.b16 %v332
    %v425 = vunpack.c.l.b16 %v333
    %v426 = vunpack.c.l.b16 %v334
    %v427 = vunpack.c.h.b16 %v334
    %v428 = vunpack.c.l.b16 %v335
    %v429 = vunpack.c.l.b16 %v336
    %v430 = vunpack.c.h.b16 %v336
    %v431 = vunpack.c.l.b16 %v337
    %v432 = vunpack.c.l.b16 %v338
    %v433 = vunpack.c.h.b16 %v338
    %v434 = vunpack.c.l.b16 %v339
    %v435 = vunpack.c.l.b16 %v340
    %v436 = vunpack.c.h.b16 %v340
    %v437 = vunpack.c.l.b16 %v341
    %v438 = vunpack.c.l.b16 %v342
    %v439 = vunpack.c.h.b16 %v342
    %v440 = vunpack.c.l.b16 %v343
    %v441 = vunpack.c.l.b16 %v344
    %v442 = vunpack.c.h.b16 %v344
    %v443 = vunpack.c.l.b16 %v345
    %v444 = vpack.c.b16 %v399, %v396
    %v445 = vpack.c.b16 %v400, %v397
    %v446 = vpack.c.b16 %v401, %v398
    %v447 = vpack.c.b16 %v405, %v402
    %v448 = vpack.c.b16 %v406, %v403
    %v449 = vpack.c.b16 %v407, %v404
    %v450 = vpack.c.b16 %v411, %v408
    %v451 = vpack.c.b16 %v412, %v409
    %v452 = vpack.c.b16 %v413, %v410
    %v453 = vpack.c.b16 %v417, %v414
    %v454 = vpack.c.b16 %v418, %v415
    %v455 = vpack.c.b16 %v419, %v416
    %v456 = vpack.c.b16 %v423, %v420
    %v457 = vpack.c.b16 %v424, %v421
    %v458 = vpack.c.b16 %v425, %v422
    %v459 = vpack.c.b16 %v429, %v426
    %v460 = vpack.c.b16 %v430, %v427
    %v461 = vpack.c.b16 %v431, %v428
    %v462 = vpack.c.b16 %v435, %v432
    %v463 = vpack.c.b16 %v436, %v433
    %v464 = vpack.c.b16 %v437, %v434
    %v465 = vpack.c.b16 %v441, %v438
    %v466 = vpack.c.b16 %v442, %v439
    %v467 = vpack.c.b16 %v443, %v440
    %492 = vmatprep.subr.bf16.mxu0 %v445
    %493 = vmatpush1.bf16.msra.mxu0 %v444
    %494 = vmatprep.subr.bf16.mxu0 %v448
    %495 = vmatpush1.bf16.msra.mxu0 %v447
    %496 = vmatprep.subr.bf16.mxu0 %v451
    %497 = vmatpush1.bf16.msra.mxu0 %v450
    %498 = vmatprep.subr.bf16.mxu0 %v454
    %499 = vmatpush1.bf16.msra.mxu0 %v453
    %500 = vmatprep.subr.bf16.mxu0 %v457
    %501 = vmatpush1.bf16.msra.mxu0 %v456
    %502 = vmatprep.subr.bf16.mxu0 %v460
    %503 = vmatpush1.bf16.msra.mxu0 %v459
    %504 = vmatprep.subr.bf16.mxu0 %v463
    %505 = vmatpush1.bf16.msra.mxu0 %v462
    %506 = vmatprep.subr.bf16.mxu0 %v466
    %507 = vmatpush1.bf16.msra.mxu0 %v465
    %508 = vmatprep.subr.bf16.mxu0 0
    %509 = vmatpush1.bf16.msra.mxu0 0
    %510 = vmatprep.subr.bf16.mxu0 0
    %511 = vmatpush1.bf16.msra.mxu0 0
    %512 = vmatprep.subr.bf16.mxu0 0
    %513 = vmatpush1.bf16.msra.mxu0 0
    %514 = vmatprep.subr.bf16.mxu0 0
    %515 = vmatpush1.bf16.msra.mxu0 0
    %516 = vmatprep.subr.bf16.mxu0 0
    %517 = vmatpush1.bf16.msra.mxu0 0
    %518 = vmatprep.subr.bf16.mxu0 0
    %519 = vmatpush1.bf16.msra.mxu0 0
    %520 = vmatprep.subr.bf16.mxu0 0
    %521 = vmatpush1.bf16.msra.mxu0 0
    %522 = vmatprep.subr.bf16.mxu0 0
    %523 = vmatpush1.bf16.msra.mxu0 0
    %524 = vmatprep.mubr.bf16.mxu0 0
    %525 = vmatmul.mubr.bf16.gmra.mrb[0].mxu0 %v312
    %v526 = vpop.f32.mrb[0].mxu0
    %v527 = vadd.f32 %v352, %v526
    %v528 = vpop.f32.mrb[0].mxu0
    %v529 = vadd.f32 %v356, %v528
    %v530 = vpop.f32.mrb[0].mxu0
    %v531 = vpop.f32.mrb[0].mxu0
    %532 = vdwg.mxu0
    %533 = vmatprep.subr.bf16.mxu0 0
    %534 = vmatpush1.bf16.msra.mxu0 %v446
    %535 = vmatprep.subr.bf16.mxu0 0
    %536 = vmatpush1.bf16.msra.mxu0 %v449
    %537 = vmatprep.subr.bf16.mxu0 0
    %538 = vmatpush1.bf16.msra.mxu0 %v452
    %539 = vmatprep.subr.bf16.mxu0 0
    %540 = vmatpush1.bf16.msra.mxu0 %v455
    %541 = vmatprep.subr.bf16.mxu0 0
    %542 = vmatpush1.bf16.msra.mxu0 %v458
    %543 = vmatprep.subr.bf16.mxu0 0
    %544 = vmatpush1.bf16.msra.mxu0 %v461
    %545 = vmatprep.subr.bf16.mxu0 0
    %546 = vmatpush1.bf16.msra.mxu0 %v464
    %547 = vmatprep.subr.bf16.mxu0 0
    %548 = vmatpush1.bf16.msra.mxu0 %v467
    %549 = vmatprep.subr.bf16.mxu0 0
    %550 = vmatpush1.bf16.msra.mxu0 0
    %551 = vmatprep.subr.bf16.mxu0 0
    %552 = vmatpush1.bf16.msra.mxu0 0
    %553 = vmatprep.subr.bf16.mxu0 0
    %554 = vmatpush1.bf16.msra.mxu0 0
    %555 = vmatprep.subr.bf16.mxu0 0
    %556 = vmatpush1.bf16.msra.mxu0 0
    %557 = vmatprep.subr.bf16.mxu0 0
    %558 = vmatpush1.bf16.msra.mxu0 0
    %559 = vmatprep.subr.bf16.mxu0 0
    %560 = vmatpush1.bf16.msra.mxu0 0
    %561 = vmatprep.subr.bf16.mxu0 0
    %562 = vmatpush1.bf16.msra.mxu0 0
    %563 = vmatprep.subr.bf16.mxu0 0
    %564 = vmatpush1.bf16.msra.mxu0 0
    %565 = vmatprep.mubr.bf16.mxu0 0
    %566 = vmatmul.mubr.bf16.gmra.mrb[0].mxu0 %v312
    %v567 = vpop.f32.mrb[0].mxu0
    %v568 = vadd.f32 %v360, %v567
    %v569 = vpop.f32.mrb[0].mxu0
    %v570 = vpop.f32.mrb[0].mxu0
    %v571 = vpop.f32.mrb[0].mxu0
    %572 = vdwg.mxu0
    %v573 = vxor.u32 %v527, 2147483648
    %v574 = vmul.f32 %v573, 1.442695
    %v575 = vpow.pop %v574
    %v576 = vadd.f32 %v575, 1.0
    %v577 = vrcp.pop %v576
    %v578 = vmul.f32 1.0, %v577
    %v579 = vmax.f32 %v529, 0.0
    %v580 = vsub.f32 %v579, %v568
    %v581 = vmul.f32 %v578, %v580
    %v582 = vadd.f32 %v568, %v581
    %583 = vst [vmem:[#allocation7] sm:$0xff] %v582
    // Predicated region
    $region22: #{tpu_custom_call.1} parent=1 // pred_check
      _
    $region23: #{tpu_custom_call.1} parent=1 // pred_check_branch
      %585 = sbr.rel (0) target = $region25
    $region24: #{tpu_custom_call.1} parent=1 // pred_region
      %s587 = ssub.s32 128, 128
      %588 = vsyncadd [#allocation4], %s587
      %s590 = sshll.u32 [#allocation7], 4
      %s591 = int_to_ptr.vmem [resolvable:$true] %s590
      %593 = dma.vmem_to_hbm [thread:$0]  %s591, 128, %s3, [#allocation4]
    $region25: #{tpu_custom_call.1} parent=1 // pred_fallthru
      _
    // Predicated region
    $region26: #{tpu_custom_call.1} parent=1 // pred_check
      _
    $region27: #{tpu_custom_call.1} parent=1 // pred_check_branch
      %595 = sbr.rel (0) target = $region29
    $region28: #{tpu_custom_call.1} parent=1 // pred_region
      %596 = dma.done [#allocation4], 128
    $region29: #{tpu_custom_call.1} parent=1 // pred_fallthru
      _
    %597 = vsyncpa [#allocation3], 1
    %598 = vsyncpa [#allocation6], 1
    %599 = vsyncpa [#allocation4], 1

</llo_original>
